<compile_context>
chip_gen: v7x
topology: tpu7x:2x2x1
jax: 0.10.0
libtpu: 0.0.40
codegen_flags: <defaults>
</compile_context>

<pallas_src>
import jax
import jax.numpy as jnp
from jax.experimental import pallas as pl
from jax.experimental.pallas import tpu as pltpu

# ---------------- synthetic config (small) ----------------
TARGET_DIM = 8     # K  (features)
TRAJ_LEN   = 16    # L  (sequence length)
CHANNELS   = 32    # C  diffmodel hidden channels
EMB_DIM    = 32    # E  diffusion-step embedding dim
NUM_STEPS  = 8     # T
BETA_START = 1e-4
BETA_END   = 0.5

# -------- packed-constant-buffer layout (rows; all sublane-aligned, 32 lanes wide) ------
_C, _E, _K, _T = CHANNELS, EMB_DIM, TARGET_DIM, NUM_STEPS
_OFF_EMBT  = 0                    # emb_table^T          (E, T)
_OFF_W1    = _OFF_EMBT + _E       # W1^T                 (C, E)
_OFF_B1    = _OFF_W1 + _C         # b1 column            (C, 1)
_OFF_W2    = _OFF_B1 + _C         # W2^T                 (C, C)
_OFF_B2    = _OFF_W2 + _C         # b2 column            (C, 1)
_OFF_WIN   = _OFF_B2 + _C         # w_in^T               (C, K)
_OFF_BIN   = _OFF_WIN + _C        # b_in column          (C, 1)
_OFF_WMID  = _OFF_BIN + _C        # w_mid^T              (C, C)
_OFF_BMID  = _OFF_WMID + _C       # b_mid column         (C, 1)
_OFF_WOUT  = _OFF_BMID + _C       # w_out^T              (K, C)
_OFF_BOUT  = _OFF_WOUT + _K       # b_out column         (K, 1)
_OFF_ALPHA = _OFF_BOUT + _K       # alpha row            (1, T)
_PACK_ROWS = ((_OFF_ALPHA + 1 + 7) // 8) * 8
_PACK_COLS = max(_C, _E, _K, _T)  # 32


def silu(x):
    # x * sigmoid(x); same formula used in the reference and inside the kernel.
    return x / (1.0 + jnp.exp(-x))


def make_params(key):
    ks = jax.random.split(key, 8)
    s = 0.1
    # diffusion schedule ('quad'):  beta = linspace(sqrt(bs), sqrt(be), T)^2
    beta = jnp.linspace(BETA_START ** 0.5, BETA_END ** 0.5, NUM_STEPS) ** 2
    alpha_hat = 1.0 - beta
    alpha = jnp.cumprod(alpha_hat).astype(jnp.float32)
    # CSDI-style sin/cos diffusion-step embedding table
    steps = jnp.arange(NUM_STEPS, dtype=jnp.float32)[:, None]
    freqs = (10.0 ** (jnp.arange(EMB_DIM // 2, dtype=jnp.float32)
                      / (EMB_DIM // 2 - 1) * 4.0))[None, :]
    table = steps * freqs
    emb_table = jnp.concatenate([jnp.sin(table), jnp.cos(table)], axis=1).astype(jnp.float32)

    params = dict(
        alpha=alpha,
        emb_table=emb_table,                                           # (T, E)
        # diffusion-embedding projections (glue MLP)
        W1=s * jax.random.normal(ks[0], (EMB_DIM, CHANNELS), jnp.float32),
        b1=jnp.zeros((CHANNELS,), jnp.float32),
        W2=s * jax.random.normal(ks[1], (CHANNELS, CHANNELS), jnp.float32),
        b2=jnp.zeros((CHANNELS,), jnp.float32),
        # 1x1-conv score network; logical storage is (in, out) like the reference
        w_in=s * jax.random.normal(ks[2], (TARGET_DIM, CHANNELS), jnp.float32),
        b_in=s * jax.random.normal(ks[3], (1, CHANNELS), jnp.float32),
        w_mid=s * jax.random.normal(ks[4], (CHANNELS, CHANNELS), jnp.float32),
        b_mid=s * jax.random.normal(ks[5], (1, CHANNELS), jnp.float32),
        w_out=s * jax.random.normal(ks[6], (CHANNELS, TARGET_DIM), jnp.float32),
        b_out=s * jax.random.normal(ks[7], (1, TARGET_DIM), jnp.float32),
    )

    # ---- pack every constant into ONE resident (312, 32) buffer (built once, at init) --
    P = jnp.zeros((_PACK_ROWS, _PACK_COLS), jnp.float32)
    P = P.at[_OFF_EMBT:_OFF_EMBT + _E, 0:_T].set(emb_table.T)
    P = P.at[_OFF_W1:_OFF_W1 + _C, 0:_E].set(params['W1'].T)
    P = P.at[_OFF_B1:_OFF_B1 + _C, 0].set(params['b1'])
    P = P.at[_OFF_W2:_OFF_W2 + _C, 0:_C].set(params['W2'].T)
    P = P.at[_OFF_B2:_OFF_B2 + _C, 0].set(params['b2'])
    P = P.at[_OFF_WIN:_OFF_WIN + _C, 0:_K].set(params['w_in'].T)
    P = P.at[_OFF_BIN:_OFF_BIN + _C, 0].set(params['b_in'][0])
    P = P.at[_OFF_WMID:_OFF_WMID + _C, 0:_C].set(params['w_mid'].T)
    P = P.at[_OFF_BMID:_OFF_BMID + _C, 0].set(params['b_mid'][0])
    P = P.at[_OFF_WOUT:_OFF_WOUT + _K, 0:_C].set(params['w_out'].T)
    P = P.at[_OFF_BOUT:_OFF_BOUT + _K, 0].set(params['b_out'][0])
    P = P.at[_OFF_ALPHA, 0:_T].set(alpha)
    params['packed'] = P
    return params


def _csdi_loss_kernel(t_ref, obs_ref, noi_ref, p_ref, out_ref):
    """One grid step = one batch element. Fully fused my_loss (noising + score net + SSE)."""
    b = pl.program_id(0)
    t_b = t_ref[b]                                     # scalar int32 from SMEM prefetch

    # ---- unpack resident constants (static, sublane-aligned slices) ----
    embT  = p_ref[_OFF_EMBT:_OFF_EMBT + _E, 0:_T]      # (E, T)
    w1    = p_ref[_OFF_W1:_OFF_W1 + _C, 0:_E]          # (C, E)
    b1    = p_ref[_OFF_B1:_OFF_B1 + _C, 0:1]           # (C, 1)
    w2    = p_ref[_OFF_W2:_OFF_W2 + _C, 0:_C]          # (C, C)
    b2    = p_ref[_OFF_B2:_OFF_B2 + _C, 0:1]
    w_in  = p_ref[_OFF_WIN:_OFF_WIN + _C, 0:_K]        # (C, K)
    b_in  = p_ref[_OFF_BIN:_OFF_BIN + _C, 0:1]
    w_mid = p_ref[_OFF_WMID:_OFF_WMID + _C, 0:_C]      # (C, C)
    b_mid = p_ref[_OFF_BMID:_OFF_BMID + _C, 0:1]
    w_out = p_ref[_OFF_WOUT:_OFF_WOUT + _K, 0:_C]      # (K, C)
    b_out = p_ref[_OFF_BOUT:_OFF_BOUT + _K, 0:1]       # (K, 1)
    alpha = p_ref[_OFF_ALPHA:_OFF_ALPHA + 1, 0:_T]     # (1, T)

    # lane mask selecting diffusion step t_b (VPU compare + XLU lane reduce; no MXU push)
    sel = (jax.lax.broadcasted_iota(jnp.int32, (1, _T), 1) == t_b).astype(jnp.float32)

    # q(x_t | x_0) scales:  sqrt(alpha_t), sqrt(1 - alpha_t)    -> (1, 1) each
    ca = jnp.sum(jnp.sqrt(alpha) * sel, axis=1, keepdims=True)
    cb = jnp.sum(jnp.sqrt(1.0 - alpha) * sel, axis=1, keepdims=True)

    # diffusion-step-embedding MLP, channels-first, evaluated for all T steps at once
    # (T=8 columns; same cost as one column at MXU granularity), then column t_b selected.
    z = jnp.dot(w1, embT, preferred_element_type=jnp.float32) + b1          # (C, T)
    z = silu(z)
    z = jnp.dot(w2, z, preferred_element_type=jnp.float32) + b2             # (C, T)
    z = silu(z)
    demb = jnp.sum(z * sel, axis=1, keepdims=True)                          # (C, 1)

    obs = obs_ref[...]                                                       # (K, L)
    noi = noi_ref[...]                                                       # (K, L)
    noisy = ca * obs + cb * noi                                              # in-kernel noising

    # 1x1-conv score network, channels-first (no transposes anywhere)
    h = jnp.dot(w_in, noisy, preferred_element_type=jnp.float32) + b_in      # (C, L)
    h = jnp.maximum(h, 0.0) + demb                                           # step conditioning
    h = jnp.dot(w_mid, h, preferred_element_type=jnp.float32) + b_mid        # (C, L)
    h = jnp.maximum(h, 0.0)
    pred = jnp.dot(w_out, h, preferred_element_type=jnp.float32) + b_out     # (K, L)

    resid = noi - pred
    out_ref[...] = jnp.full((1, 1), jnp.sum(resid * resid), jnp.float32)


def csdi_my_loss_pallas(observed_data, noise, t, params):
    """my_loss (training path of CSDI_base.forward), fully fused into one pallas_call."""
    B, K, L = observed_data.shape
    packed = params['packed']

    # advisory cost hint for XLA scheduling around the custom call
    matmul_flops = 2 * _C * _T * (_E + _C) + 2 * L * _C * (2 * K + _C)
    elem_flops = 6 * _C * _T + 8 * K * L + 4 * _T
    cost = pl.CostEstimate(
        flops=B * (matmul_flops + elem_flops),
        transcendentals=B * 2 * _C * _T,
        bytes_accessed=4 * (2 * B * K * L + _PACK_ROWS * _PACK_COLS + 2 * B),
    )

    partials = pl.pallas_call(
        _csdi_loss_kernel,
        out_shape=jax.ShapeDtypeStruct((B, 1, 1), jnp.float32),
        grid_spec=pltpu.PrefetchScalarGridSpec(
            num_scalar_prefetch=1,                       # t -> SMEM, available to index_maps
            grid=(B,),
            in_specs=[
                pl.BlockSpec((None, K, L), lambda b, tref: (b, 0, 0)),   # observed (per batch)
                pl.BlockSpec((None, K, L), lambda b, tref: (b, 0, 0)),   # noise    (per batch)
                pl.BlockSpec((_PACK_ROWS, _PACK_COLS),
                             lambda b, tref: (0, 0)),                    # packed consts (resident)
            ],
            out_specs=pl.BlockSpec((None, 1, 1), lambda b, tref: (b, 0, 0)),
        ),
        compiler_params=pltpu.CompilerParams(
            dimension_semantics=("parallel",)),          # shards batches across v7x's 2 TCs
        cost_estimate=cost,
    )(t.astype(jnp.int32), observed_data, noise, packed)

    # per-batch partial sums -> final loss; num_eval = len(noise) = B
    return jnp.sum(partials) / B


def csdi_my_loss_ref(observed_data, noise, t, params):
    """Pure-JAX reference of the same forward, for correctness checking."""
    B, K, L = observed_data.shape
    alpha_t = params['alpha'][t].reshape(B, 1, 1)
    noisy = jnp.sqrt(alpha_t) * observed_data + jnp.sqrt(1.0 - alpha_t) * noise
    emb = params['emb_table'][t]
    demb = silu(emb @ params['W1'] + params['b1'])
    demb = silu(demb @ params['W2'] + params['b2'])          # (B, C)
    x = jnp.transpose(noisy, (0, 2, 1))                      # (B, L, K)
    h = jnp.maximum(jnp.einsum('blk,kc->blc', x, params['w_in']) + params['b_in'], 0.0)
    h = h + demb[:, None, :]
    h = jnp.maximum(jnp.einsum('blc,cd->bld', h, params['w_mid']) + params['b_mid'], 0.0)
    pred_lk = jnp.einsum('blc,ck->blk', h, params['w_out']) + params['b_out']
    pred = jnp.transpose(pred_lk, (0, 2, 1))                 # (B, K, L)
    resid = noise - pred
    return jnp.sum(resid ** 2) / B


if __name__ == "__main__":
    B = 2
    key = jax.random.PRNGKey(0)
    k_param, k_obs, k_t, k_noise = jax.random.split(key, 4)

    params = make_params(k_param)
    observed_data = jax.random.normal(k_obs, (B, TARGET_DIM, TRAJ_LEN), jnp.float32)
    # torch.randint / torch.randn_like replaced by deterministic jax.random draws
    t = jax.random.randint(k_t, (B,), 0, NUM_STEPS)
    noise = jax.random.normal(k_noise, observed_data.shape, jnp.float32)

    loss_fn = jax.jit(csdi_my_loss_pallas)
    loss = jax.block_until_ready(loss_fn(observed_data, noise, t, params))

    loss_ref = csdi_my_loss_ref(observed_data, noise, t, params)
    assert jnp.isfinite(loss), "non-finite loss"
    assert jnp.allclose(loss, loss_ref, rtol=1e-4, atol=1e-5), (loss, loss_ref)

    print("KERNEL_OK")
</pallas_src>

<mosaic_0001>
module attributes {stable_mosaic.version = 11 : i64} {
  func.func @_csdi_loss_kernel(%arg0: i32, %arg1: memref<2xi32, #tpu.memory_space<smem>>, %arg2: memref<1x8x16xf32, #tpu.memory_space<vmem>>, %arg3: memref<1x8x16xf32, #tpu.memory_space<vmem>>, %arg4: memref<312x32xf32, #tpu.memory_space<vmem>>, %arg5: memref<1x1x1xf32, #tpu.memory_space<vmem>>) attributes {dimension_semantics = [#tpu.dimension_semantics<parallel>], iteration_bounds = array<i64: 2>, scalar_prefetch = 1 : i64, scratch_operands = 0 : i64, tpu.core_type = #tpu.core_type<tc>, window_params = [{transform_indices = @transform_0, window_bounds = array<i64: 1, 8, 16>}, {transform_indices = @transform_1, window_bounds = array<i64: 1, 8, 16>}, {pipeline_mode = #tpu.pipeline_mode<synchronous>, transform_indices = @transform_2, window_bounds = array<i64: 312, 32>}, {transform_indices = @transform_3, window_bounds = array<i64: 1, 1, 1>}]} {
    %0 = arith.index_cast %arg0 : i32 to index
    %1 = memref.load %arg1[%0] : memref<2xi32, #tpu.memory_space<smem>>
    %c0 = arith.constant 0 : index
    %c0_0 = arith.constant 0 : index
    %2 = vector.load %arg4[%c0, %c0_0] : memref<312x32xf32, #tpu.memory_space<vmem>>, vector<32x8xf32>
    %c32 = arith.constant 32 : index
    %c0_1 = arith.constant 0 : index
    %3 = vector.load %arg4[%c32, %c0_1] : memref<312x32xf32, #tpu.memory_space<vmem>>, vector<32x32xf32>
    %c64 = arith.constant 64 : index
    %c0_2 = arith.constant 0 : index
    %4 = vector.load %arg4[%c64, %c0_2] : memref<312x32xf32, #tpu.memory_space<vmem>>, vector<32x1xf32>
    %c96 = arith.constant 96 : index
    %c0_3 = arith.constant 0 : index
    %5 = vector.load %arg4[%c96, %c0_3] : memref<312x32xf32, #tpu.memory_space<vmem>>, vector<32x32xf32>
    %c128 = arith.constant 128 : index
    %c0_4 = arith.constant 0 : index
    %6 = vector.load %arg4[%c128, %c0_4] : memref<312x32xf32, #tpu.memory_space<vmem>>, vector<32x1xf32>
    %c160 = arith.constant 160 : index
    %c0_5 = arith.constant 0 : index
    %7 = vector.load %arg4[%c160, %c0_5] : memref<312x32xf32, #tpu.memory_space<vmem>>, vector<32x8xf32>
    %c192 = arith.constant 192 : index
    %c0_6 = arith.constant 0 : index
    %8 = vector.load %arg4[%c192, %c0_6] : memref<312x32xf32, #tpu.memory_space<vmem>>, vector<32x1xf32>
    %c224 = arith.constant 224 : index
    %c0_7 = arith.constant 0 : index
    %9 = vector.load %arg4[%c224, %c0_7] : memref<312x32xf32, #tpu.memory_space<vmem>>, vector<32x32xf32>
    %c256 = arith.constant 256 : index
    %c0_8 = arith.constant 0 : index
    %10 = vector.load %arg4[%c256, %c0_8] : memref<312x32xf32, #tpu.memory_space<vmem>>, vector<32x1xf32>
    %c288 = arith.constant 288 : index
    %c0_9 = arith.constant 0 : index
    %11 = vector.load %arg4[%c288, %c0_9] : memref<312x32xf32, #tpu.memory_space<vmem>>, vector<8x32xf32>
    %c296 = arith.constant 296 : index
    %c0_10 = arith.constant 0 : index
    %12 = vector.load %arg4[%c296, %c0_10] : memref<312x32xf32, #tpu.memory_space<vmem>>, vector<8x1xf32>
    %c304 = arith.constant 304 : index
    %c0_11 = arith.constant 0 : index
    %13 = vector.load %arg4[%c304, %c0_11] : memref<312x32xf32, #tpu.memory_space<vmem>>, vector<1x8xf32>
    %14 = tpu.iota {dimensions = array<i32: 1>} : vector<1x8xi32>
    %15 = vector.broadcast %1 : i32 to vector<1x8xi32>
    %16 = arith.cmpi eq, %14, %15 : vector<1x8xi32>
    %17 = arith.extui %16 : vector<1x8xi1> to vector<1x8xi32>
    %18 = arith.sitofp %17 : vector<1x8xi32> to vector<1x8xf32>
    %19 = math.sqrt %13 : vector<1x8xf32>
    %20 = arith.mulf %19, %18 : vector<1x8xf32>
    %cst = arith.constant dense<0.000000e+00> : vector<1xf32>
    %21 = vector.multi_reduction <add>, %20, %cst [1] : vector<1x8xf32> to vector<1xf32>
    %22 = vector.shape_cast %21 : vector<1xf32> to vector<1x1xf32>
    %cst_12 = arith.constant 1.000000e+00 : f32
    %23 = vector.broadcast %cst_12 : f32 to vector<1x8xf32>
    %24 = arith.subf %23, %13 : vector<1x8xf32>
    %25 = math.sqrt %24 : vector<1x8xf32>
    %26 = arith.mulf %25, %18 : vector<1x8xf32>
    %cst_13 = arith.constant dense<0.000000e+00> : vector<1xf32>
    %27 = vector.multi_reduction <add>, %26, %cst_13 [1] : vector<1x8xf32> to vector<1xf32>
    %28 = vector.shape_cast %27 : vector<1xf32> to vector<1x1xf32>
    %cst_14 = arith.constant dense<0.000000e+00> : vector<32x8xf32>
    %29 = tpu.matmul %3, %2, %cst_14 {dimension_numbers = #tpu.dot_dimension_numbers<[1], [0], [0], [1], [0, 0, 1, 1], [], []>} : vector<32x32xf32>, vector<32x8xf32>, vector<32x8xf32> -> vector<32x8xf32>
    %30 = vector.broadcast %4 : vector<32x1xf32> to vector<32x8xf32>
    %31 = arith.addf %29, %30 : vector<32x8xf32>
    %cst_15 = arith.constant 0.000000e+00 : f32
    %32 = vector.broadcast %cst_15 : f32 to vector<32x8xf32>
    %33 = arith.subf %32, %31 : vector<32x8xf32>
    %34 = math.exp %33 : vector<32x8xf32>
    %cst_16 = arith.constant 1.000000e+00 : f32
    %35 = vector.broadcast %cst_16 : f32 to vector<32x8xf32>
    %36 = arith.addf %35, %34 : vector<32x8xf32>
    %37 = arith.divf %31, %36 : vector<32x8xf32>
    %cst_17 = arith.constant dense<0.000000e+00> : vector<32x8xf32>
    %38 = tpu.matmul %5, %37, %cst_17 {dimension_numbers = #tpu.dot_dimension_numbers<[1], [0], [0], [1], [0, 0, 1, 1], [], []>} : vector<32x32xf32>, vector<32x8xf32>, vector<32x8xf32> -> vector<32x8xf32>
    %39 = vector.broadcast %6 : vector<32x1xf32> to vector<32x8xf32>
    %40 = arith.addf %38, %39 : vector<32x8xf32>
    %cst_18 = arith.constant 0.000000e+00 : f32
    %41 = vector.broadcast %cst_18 : f32 to vector<32x8xf32>
    %42 = arith.subf %41, %40 : vector<32x8xf32>
    %43 = math.exp %42 : vector<32x8xf32>
    %cst_19 = arith.constant 1.000000e+00 : f32
    %44 = vector.broadcast %cst_19 : f32 to vector<32x8xf32>
    %45 = arith.addf %44, %43 : vector<32x8xf32>
    %46 = arith.divf %40, %45 : vector<32x8xf32>
    %47 = vector.broadcast %18 : vector<1x8xf32> to vector<32x8xf32>
    %48 = arith.mulf %46, %47 : vector<32x8xf32>
    %cst_20 = arith.constant dense<0.000000e+00> : vector<32xf32>
    %49 = vector.multi_reduction <add>, %48, %cst_20 [1] : vector<32x8xf32> to vector<32xf32>
    %50 = vector.shape_cast %49 : vector<32xf32> to vector<32x1xf32>
    %c0_21 = arith.constant 0 : index
    %c0_22 = arith.constant 0 : index
    %c0_23 = arith.constant 0 : index
    %51 = vector.load %arg2[%c0_21, %c0_22, %c0_23] : memref<1x8x16xf32, #tpu.memory_space<vmem>>, vector<1x8x16xf32>
    %52 = vector.shape_cast %51 : vector<1x8x16xf32> to vector<8x16xf32>
    %c0_24 = arith.constant 0 : index
    %c0_25 = arith.constant 0 : index
    %c0_26 = arith.constant 0 : index
    %53 = vector.load %arg3[%c0_24, %c0_25, %c0_26] : memref<1x8x16xf32, #tpu.memory_space<vmem>>, vector<1x8x16xf32>
    %54 = vector.shape_cast %53 : vector<1x8x16xf32> to vector<8x16xf32>
    %55 = vector.broadcast %22 : vector<1x1xf32> to vector<8x16xf32>
    %56 = arith.mulf %55, %52 : vector<8x16xf32>
    %57 = vector.broadcast %28 : vector<1x1xf32> to vector<8x16xf32>
    %58 = arith.mulf %57, %54 : vector<8x16xf32>
    %59 = arith.addf %56, %58 : vector<8x16xf32>
    %cst_27 = arith.constant dense<0.000000e+00> : vector<32x16xf32>
    %60 = tpu.matmul %7, %59, %cst_27 {dimension_numbers = #tpu.dot_dimension_numbers<[1], [0], [0], [1], [0, 0, 1, 1], [], []>} : vector<32x8xf32>, vector<8x16xf32>, vector<32x16xf32> -> vector<32x16xf32>
    %61 = vector.broadcast %8 : vector<32x1xf32> to vector<32x16xf32>
    %62 = arith.addf %60, %61 : vector<32x16xf32>
    %cst_28 = arith.constant 0.000000e+00 : f32
    %63 = vector.broadcast %cst_28 : f32 to vector<32x16xf32>
    %64 = arith.maximumf %62, %63 : vector<32x16xf32>
    %65 = vector.broadcast %50 : vector<32x1xf32> to vector<32x16xf32>
    %66 = arith.addf %64, %65 : vector<32x16xf32>
    %cst_29 = arith.constant dense<0.000000e+00> : vector<32x16xf32>
    %67 = tpu.matmul %9, %66, %cst_29 {dimension_numbers = #tpu.dot_dimension_numbers<[1], [0], [0], [1], [0, 0, 1, 1], [], []>} : vector<32x32xf32>, vector<32x16xf32>, vector<32x16xf32> -> vector<32x16xf32>
    %68 = vector.broadcast %10 : vector<32x1xf32> to vector<32x16xf32>
    %69 = arith.addf %67, %68 : vector<32x16xf32>
    %cst_30 = arith.constant 0.000000e+00 : f32
    %70 = vector.broadcast %cst_30 : f32 to vector<32x16xf32>
    %71 = arith.maximumf %69, %70 : vector<32x16xf32>
    %cst_31 = arith.constant dense<0.000000e+00> : vector<8x16xf32>
    %72 = tpu.matmul %11, %71, %cst_31 {dimension_numbers = #tpu.dot_dimension_numbers<[1], [0], [0], [1], [0, 0, 1, 1], [], []>} : vector<8x32xf32>, vector<32x16xf32>, vector<8x16xf32> -> vector<8x16xf32>
    %73 = vector.broadcast %12 : vector<8x1xf32> to vector<8x16xf32>
    %74 = arith.addf %72, %73 : vector<8x16xf32>
    %75 = arith.subf %54, %74 : vector<8x16xf32>
    %76 = arith.mulf %75, %75 : vector<8x16xf32>
    %77 = vector.shape_cast %76 : vector<8x16xf32> to vector<1x8x16xf32>
    %cst_32 = arith.constant dense<0.000000e+00> : vector<1xf32>
    %78 = vector.multi_reduction <add>, %77, %cst_32 [1, 2] : vector<1x8x16xf32> to vector<1xf32>
    %79 = vector.shape_cast %78 : vector<1xf32> to vector<1x1x1xf32>
    %80 = vector.extract %79[0, 0, 0] : f32 from vector<1x1x1xf32>
    %81 = vector.broadcast %80 : f32 to vector<1x1xf32>
    %c0_33 = arith.constant 0 : index
    %c0_34 = arith.constant 0 : index
    %c0_35 = arith.constant 0 : index
    %82 = vector.load %arg5[%c0_33, %c0_34, %c0_35] : memref<1x1x1xf32, #tpu.memory_space<vmem>>, vector<1x1x1xf32>
    %83 = vector.shape_cast %82 : vector<1x1x1xf32> to vector<1x1xf32>
    %84 = vector.shape_cast %81 : vector<1x1xf32> to vector<1x1x1xf32>
    tpu.vector_store %arg5[%c0_33, %c0_34, %c0_35], %84 {strides = array<i32>} : memref<1x1x1xf32, #tpu.memory_space<vmem>>, vector<1x1x1xf32>,
    return
  }
  func.func @transform_0(%arg0: i32, %arg1: memref<2xi32, #tpu.memory_space<smem>>) -> (i32, i32, i32) {
    %c0_i32 = arith.constant 0 : i32
    %c0_i32_0 = arith.constant 0 : i32
    %c0_i32_1 = arith.constant 0 : i32
    return %arg0, %c0_i32, %c0_i32_0 : i32, i32, i32
  }
  func.func @transform_1(%arg0: i32, %arg1: memref<2xi32, #tpu.memory_space<smem>>) -> (i32, i32, i32) {
    %c0_i32 = arith.constant 0 : i32
    %c0_i32_0 = arith.constant 0 : i32
    %c0_i32_1 = arith.constant 0 : i32
    return %arg0, %c0_i32, %c0_i32_0 : i32, i32, i32
  }
  func.func @transform_2(%arg0: i32, %arg1: memref<2xi32, #tpu.memory_space<smem>>) -> (i32, i32) {
    %c0_i32 = arith.constant 0 : i32
    %c0_i32_0 = arith.constant 0 : i32
    %c0_i32_1 = arith.constant 0 : i32
    return %c0_i32, %c0_i32_0 : i32, i32
  }
  func.func @transform_3(%arg0: i32, %arg1: memref<2xi32, #tpu.memory_space<smem>>) -> (i32, i32, i32) {
    %c0_i32 = arith.constant 0 : i32
    %c0_i32_0 = arith.constant 0 : i32
    %c0_i32_1 = arith.constant 0 : i32
    return %arg0, %c0_i32, %c0_i32_0 : i32, i32, i32
  }
}

</mosaic_0001>

<llo_original>
// kernel: csdi_my_loss_pallas.1
$region0: #{csdi_my_loss_pallas.1}
  #allocation0 [shape = 'u32[]', space=smem, size = 0x4, offset = 0x4, fixed_abs, tag = 'smem constant byte address 0x4 - core index']
  #allocation1 [shape = 'u32[144,128]{1,0:T(1,128)}', space=vmem, size = 0x12000, scoped, tag = 'internal scratch']
  #allocation2 [shape = 's32[1]{0}', space=sflag, size = 0x4, scoped, tag = 'scoped memory for csdi_my_loss_pallas.1']
  #allocation3 [shape = 'u8[512]{0}', space=smem, size = 0x200, scoped, tag = 'prefetched SMEM operand 0']
  %s0 = inlined_call_operand.vmem [shape: s32[2], index: 0, kind: input, shape index: {}]
  %s1 = inlined_call_operand.vmem [shape: f32[2,8,16], index: 1, kind: input, shape index: {}]
  %s2 = inlined_call_operand.vmem [shape: f32[2,8,16], index: 2, kind: input, shape index: {}]
  %s3 = inlined_call_operand.vmem [shape: f32[312,32], index: 3, kind: input, shape index: {}]
  %s4 = inlined_call_operand.vmem [shape: f32[2,1,1], index: 4, kind: output, shape index: {}]
  %s5 = sld [smem:[#allocation0]]
  $region45: #{csdi_my_loss_pallas.1} parent=0
    _
  %s7 = ssub.s32 1, %s5
  %s8 = scalar_select 0, %s7, %s5
  %s9 = sshll.u32 %s0, 4
  %s10 = int_to_ptr.vmem [resolvable:$true] %s9
  %12 = dma.vmem_to_smem %s10, 16, [#allocation3], [#allocation2]
  %13 = dma.done [#allocation2], 16
  %14 = sfence
  loop: start=0, step=1, limit=4
  $region2: #{csdi_my_loss_pallas.1} parent=0 // loop_pre_header
    _
  $region3: #{csdi_my_loss_pallas.1} parent=0 // loop_header
    %s16 = sphi 0, %s20
    %p17 = scmp.ge.s32.totalorder %s16, 4
    %s26 = sphi 0, %s28
    %s29 = sphi 0, %s26
    %s30 = sphi 0, %s29
    %s46 = sphi 0, %s30
    %s52 = sphi 0, %s54
    %s55 = sphi 0, %s52
    %s56 = sphi 0, %s55
    %s72 = sphi 0, %s56
    %s76 = sphi 0, %s76
    %s78 = sphi 0, %s76
    %s79 = sphi 0, %s78
    %s93 = sphi 0, %s79
    %s99 = sphi 0, %s101
    %s102 = sphi 0, %s99
    %s103 = sphi 0, %s102
    %s119 = sphi 0, %s103
  $region4: #{csdi_my_loss_pallas.1} parent=0 // loop_header_branch
    %19 = sbr.rel (%p17) target = $region8
  $region5: #{csdi_my_loss_pallas.1} parent=0 // loop_body
    %s21 = ssub.s32 %s16, 1
    %s22 = ssub.s32 %s16, 2
    %s23 = sadd.s32 %s16, 1
    %s24 = ssub.s32 %s16, %s23
    %p25 = scmp.eq.s32.totalorder %s24, 0
    %s27 = sadd.s32 %s26, 1
    %s28 = scalar_select %p25, %s26, %s27
    %p31 = pneg %p25
    %p32 = scmp.eq.s32.totalorder %s16, 1
    %p33 = por %p31, %p32
    %p34 = scmp.ne.s32.totalorder %s26, %s29
    %p35 = scmp.eq.s32.totalorder %s16, 0
    %p36 = por %p34, %p35
    %p37 = scmp.ne.s32.totalorder %s26, %s29
    %p38 = scmp.eq.s32.totalorder %s21, 1
    %p39 = por %p37, %p38
    %p40 = scmp.ne.s32.totalorder %s29, %s30
    %p41 = scmp.eq.s32.totalorder %s21, 0
    %p42 = por %p40, %p41
    %p43 = scmp.ne.s32.totalorder %s29, %s30
    %p44 = scmp.eq.s32.totalorder %s22, 1
    %p45 = por %p43, %p44
    %p47 = scmp.ne.s32.totalorder %s30, %s46
    %p48 = scmp.eq.s32.totalorder %s22, 0
    %p49 = por %p47, %p48
    %s50 = ssub.s32 %s16, %s23
    %p51 = scmp.eq.s32.totalorder %s50, 0
    %s53 = sadd.s32 %s52, 1
    %s54 = scalar_select %p51, %s52, %s53
    %p57 = pneg %p51
    %p58 = scmp.eq.s32.totalorder %s16, 1
    %p59 = por %p57, %p58
    %p60 = scmp.ne.s32.totalorder %s52, %s55
    %p61 = scmp.eq.s32.totalorder %s16, 0
    %p62 = por %p60, %p61
    %p63 = scmp.ne.s32.totalorder %s52, %s55
    %p64 = scmp.eq.s32.totalorder %s21, 1
    %p65 = por %p63, %p64
    %p66 = scmp.ne.s32.totalorder %s55, %s56
    %p67 = scmp.eq.s32.totalorder %s21, 0
    %p68 = por %p66, %p67
    %p69 = scmp.ne.s32.totalorder %s55, %s56
    %p70 = scmp.eq.s32.totalorder %s22, 1
    %p71 = por %p69, %p70
    %p73 = scmp.ne.s32.totalorder %s56, %s72
    %p74 = scmp.eq.s32.totalorder %s22, 0
    %p75 = por %p73, %p74
    %s77 = sadd.s32 %s76, 1
    %p80 = scmp.eq.s32.totalorder %s16, 1
    %p81 = scmp.ne.s32.totalorder %s76, %s78
    %p82 = scmp.eq.s32.totalorder %s16, 0
    %p83 = por %p81, %p82
    %p84 = scmp.ne.s32.totalorder %s76, %s78
    %p85 = scmp.eq.s32.totalorder %s21, 1
    %p86 = por %p84, %p85
    %p87 = scmp.ne.s32.totalorder %s78, %s79
    %p88 = scmp.eq.s32.totalorder %s21, 0
    %p89 = por %p87, %p88
    %p90 = scmp.ne.s32.totalorder %s78, %s79
    %p91 = scmp.eq.s32.totalorder %s22, 1
    %p92 = por %p90, %p91
    %p94 = scmp.ne.s32.totalorder %s79, %s93
    %p95 = scmp.eq.s32.totalorder %s22, 0
    %p96 = por %p94, %p95
    %s97 = ssub.s32 %s16, %s23
    %p98 = scmp.eq.s32.totalorder %s97, 0
    %s100 = sadd.s32 %s99, 1
    %s101 = scalar_select %p98, %s99, %s100
    %p104 = pneg %p98
    %p105 = scmp.eq.s32.totalorder %s16, 1
    %p106 = por %p104, %p105
    %p107 = scmp.ne.s32.totalorder %s99, %s102
    %p108 = scmp.eq.s32.totalorder %s16, 0
    %p109 = por %p107, %p108
    %p110 = scmp.ne.s32.totalorder %s99, %s102
    %p111 = scmp.eq.s32.totalorder %s21, 1
    %p112 = por %p110, %p111
    %p113 = scmp.ne.s32.totalorder %s102, %s103
    %p114 = scmp.eq.s32.totalorder %s21, 0
    %p115 = por %p113, %p114
    %p116 = scmp.ne.s32.totalorder %s102, %s103
    %p117 = scmp.eq.s32.totalorder %s22, 1
    %p118 = por %p116, %p117
    %p120 = scmp.ne.s32.totalorder %s103, %s119
    %p121 = scmp.eq.s32.totalorder %s22, 0
    %p122 = por %p120, %p121
    %p123 = scmp.le.s32.totalorder 1, %s16
    %p124 = scmp.lt.s32.totalorder %s16, 3
    %p125 = pnand %p123, %p124
    %p126 = pneg %p125
    // Predicated region
    $region9: #{csdi_my_loss_pallas.1} parent=5 // pred_check
      _
    $region10: #{csdi_my_loss_pallas.1} parent=5 // pred_check_branch
      %128 = sbr.rel (%p125) target = $region12
    $region11: #{csdi_my_loss_pallas.1} parent=5 // pred_region
      %s129 = ssub.s32 %s16, 1
      // Predicated region
      $region13: #{csdi_my_loss_pallas.1} parent=11 // pred_check
        %p130 = pneg %p89
      $region14: #{csdi_my_loss_pallas.1} parent=11 // pred_check_branch
        %132 = sbr.rel (%p130) target = $region16
      $region15: #{csdi_my_loss_pallas.1} parent=11 // pred_region
        _
      $region16: #{csdi_my_loss_pallas.1} parent=11 // pred_fallthru
        _
    $region12: #{csdi_my_loss_pallas.1} parent=5 // pred_fallthru
      _
    %p133 = scmp.lt.s32.totalorder %s16, 2
    // Predicated region
    $region17: #{csdi_my_loss_pallas.1} parent=5 // pred_check
      %p134 = pneg %p133
    $region18: #{csdi_my_loss_pallas.1} parent=5 // pred_check_branch
      %136 = sbr.rel (%p134) target = $region20
    $region19: #{csdi_my_loss_pallas.1} parent=5 // pred_region
      // Predicated region
      $region21: #{csdi_my_loss_pallas.1} parent=19 // pred_check
        %p137 = pneg %p36
      $region22: #{csdi_my_loss_pallas.1} parent=19 // pred_check_branch
        %139 = sbr.rel (%p137) target = $region24
      $region23: #{csdi_my_loss_pallas.1} parent=19 // pred_region
        %p140 = scmp.lt.s32.totalorder %s16, 1
        %s141 = scalar_select %p140, %s16, 1
        %s142 = smul.addr %s141, 8
        %s143 = scalar_lea.vmem %s1, %s142
      $region24: #{csdi_my_loss_pallas.1} parent=19 // pred_fallthru
        _
      // Predicated region
      $region25: #{csdi_my_loss_pallas.1} parent=19 // pred_check
        %p144 = pneg %p62
      $region26: #{csdi_my_loss_pallas.1} parent=19 // pred_check_branch
        %146 = sbr.rel (%p144) target = $region28
      $region27: #{csdi_my_loss_pallas.1} parent=19 // pred_region
        %p147 = scmp.lt.s32.totalorder %s16, 1
        %s148 = scalar_select %p147, %s16, 1
        %s149 = smul.addr %s148, 8
        %s150 = scalar_lea.vmem %s2, %s149
      $region28: #{csdi_my_loss_pallas.1} parent=19 // pred_fallthru
        _
    $region20: #{csdi_my_loss_pallas.1} parent=5 // pred_fallthru
      _
    %p151 = scmp.le.s32.totalorder 1, %s16
    %p152 = scmp.lt.s32.totalorder %s16, 3
    %p153 = pnand %p151, %p152
    %p154 = pneg %p153
    // Predicated region
    $region29: #{csdi_my_loss_pallas.1} parent=5 // pred_check
      _
    $region30: #{csdi_my_loss_pallas.1} parent=5 // pred_check_branch
      %156 = sbr.rel (%p153) target = $region32
    $region31: #{csdi_my_loss_pallas.1} parent=5 // pred_region
      %s157 = ssub.s32 %s16, 1
      %p158 = scmp.lt.s32.totalorder %s21, 1
      %s159 = scalar_select %p158, %s21, 1
      %s160 = smul.addr %s159, 8
      %s161 = scalar_lea.vmem %s1, %s160
      %p162 = pneg %p42
      %p163 = pneg %p39
      %p164 = scmp.lt.s32.totalorder %s21, 1
      %s165 = scalar_select %p164, %s21, 1
      %s166 = smul.addr %s165, 8
      %s167 = scalar_lea.vmem %s2, %s166
      %p168 = pneg %p68
      %p169 = pneg %p65
      %p170 = pneg %p89
      %p171 = pneg %p86
      %p172 = pneg %p115
      %p173 = pneg %p112
      %p174 = scmp.lt.s32.totalorder %s21, 1
      %s175 = scalar_select %p174, %s21, 1
      %s176 = scalar_lea.vmem %s4, %s175
      %p177 = scmp.lt.s32.totalorder %s21, 1
      %s178 = scalar_select %p177, %s21, 1
      %s179 = smul.addr %s178, 8
      %s180 = scalar_lea.vmem %s1, %s179
      %p181 = scmp.lt.s32.totalorder %s21, 1
      %s182 = scalar_select %p181, %s21, 1
      %s183 = smul.addr %s182, 8
      %s184 = scalar_lea.vmem %s2, %s183
      %p185 = scmp.lt.s32.totalorder %s21, 1
      %s186 = scalar_select %p185, %s21, 1
      %s187 = scalar_lea.vmem %s4, %s186
      %s188 = sld [smem:[#allocation3 + %s21]]
      %v189 = vld [vmem:[%s3] sm:$0xff]
      %v190 = vld [vmem:[%s3 + $0x8] sm:$0xff]
      %v191 = vld [vmem:[%s3 + $0x10] sm:$0xff]
      %v192 = vld [vmem:[%s3 + $0x18] sm:$0xff]
      %v193 = vld [vmem:[%s3 + $0x20] sm:$0xff]
      %v194 = vld [vmem:[%s3 + $0x28] sm:$0xff]
      %v195 = vld [vmem:[%s3 + $0x30] sm:$0xff]
      %v196 = vld [vmem:[%s3 + $0x38] sm:$0xff]
      %v197 = vld [vmem:[%s3 + $0x40] sm:$0xff]
      %v198 = vld [vmem:[%s3 + $0x48] sm:$0xff]
      %v199 = vld [vmem:[%s3 + $0x50] sm:$0xff]
      %v200 = vld [vmem:[%s3 + $0x58] sm:$0xff]
      %v201 = vld [vmem:[%s3 + $0x60] sm:$0xff]
      %v202 = vld [vmem:[%s3 + $0x68] sm:$0xff]
      %v203 = vld [vmem:[%s3 + $0x70] sm:$0xff]
      %v204 = vld [vmem:[%s3 + $0x78] sm:$0xff]
      %v205 = vld [vmem:[%s3 + $0x80] sm:$0xff]
      %v206 = vld [vmem:[%s3 + $0x88] sm:$0xff]
      %v207 = vld [vmem:[%s3 + $0x90] sm:$0xff]
      %v208 = vld [vmem:[%s3 + $0x98] sm:$0xff]
      %v209 = vld [vmem:[%s3 + $0xa0] sm:$0xff]
      %v210 = vld [vmem:[%s3 + $0xa8] sm:$0xff]
      %v211 = vld [vmem:[%s3 + $0xb0] sm:$0xff]
      %v212 = vld [vmem:[%s3 + $0xb8] sm:$0xff]
      %v213 = vld [vmem:[%s3 + $0xc0] sm:$0xff]
      %v214 = vld [vmem:[%s3 + $0xc8] sm:$0xff]
      %v215 = vld [vmem:[%s3 + $0xd0] sm:$0xff]
      %v216 = vld [vmem:[%s3 + $0xd8] sm:$0xff]
      %v217 = vld [vmem:[%s3 + $0xe0] sm:$0xff]
      %v218 = vld [vmem:[%s3 + $0xe8] sm:$0xff]
      %v219 = vld [vmem:[%s3 + $0xf0] sm:$0xff]
      %v220 = vld [vmem:[%s3 + $0xf8] sm:$0xff]
      %v221 = vld [vmem:[%s3 + $0x100] sm:$0xff]
      %v222 = vld [vmem:[%s3 + $0x108] sm:$0xff]
      %v223 = vld [vmem:[%s3 + $0x110] sm:$0xff]
      %v224 = vld [vmem:[%s3 + $0x118] sm:$0xff]
      %v225 = vld [vmem:[%s3 + $0x120] sm:$0xff]
      %v226 = vld [vmem:[%s3 + $0x128] sm:$0xff]
      %v227 = vld [vmem:[%s3 + $0x130] sm:$0x1]
      %v228 = vlaneseq
      %v229 = vand.u32 %v228, 127
      %v230 = vstv %s188
      %vm231 = vcmp.eq.s32.totalorder %v229, %v230
      %v232 = vsel %vm231, 1, 0
      %v233 = vcvt.s32.f32 %v232
      %v234 = vrsqrt.pop %v227
      %v235 = vmul.f32 %v227, %v234
      %vm236 = vcmp.eq.f32.partialorder %v227, inf
      %v237 = vsel %vm236, %v227, %v235
      %vm238 = vcmp.eq.f32.partialorder %v227, 0.0
      %v239 = vand.u32 %v227, 2147483648
      %v240 = vsel %vm238, %v239, %v237
      %v241 = vmul.f32 %v240, %v233
      %vm242 = vcmask 57344
      %v243 = vsel %vm242, %v241, 0.0
      %244 = vadd.xlane.f32.xlu0 %v243
      %v245 = vpop.xlane.xlu0 %244
      %v246 = vsub.f32 1.0, %v227
      %v247 = vrsqrt.pop %v246
      %v248 = vmul.f32 %v246, %v247
      %vm249 = vcmp.eq.f32.partialorder %v246, inf
      %v250 = vsel %vm249, %v246, %v248
      %vm251 = vcmp.eq.f32.partialorder %v246, 0.0
      %v252 = vand.u32 %v246, 2147483648
      %v253 = vsel %vm251, %v252, %v250
      %v254 = vmul.f32 %v253, %v233
      %v255 = vsel %vm242, %v254, 0.0
      %256 = vadd.xlane.f32.xlu0 %v255
      %v257 = vpop.xlane.xlu0 %256
      %259 = vset.pattern.permute.xlu0 0
      %260 = vperm.xlu0 %259, %v197
      %v261 = vpop.permute.xlu0 %260
      %264 = vset.pattern.permute.xlu0 0
      %265 = vperm.xlu0 %264, %v198
      %v266 = vpop.permute.xlu0 %265
      %269 = vset.pattern.permute.xlu0 0
      %270 = vperm.xlu0 %269, %v199
      %v271 = vpop.permute.xlu0 %270
      %274 = vset.pattern.permute.xlu0 0
      %275 = vperm.xlu0 %274, %v200
      %v276 = vpop.permute.xlu0 %275
      %vm278 = vcmask 261120
      %v280 = vsel %vm278, %v193, 0
      %v283 = vsel %vm278, %v194, 0
      %v286 = vsel %vm278, %v195, 0
      %v289 = vsel %vm278, %v196, 0
      %291 = vmatprep.subr.mxu0 0.0
      %292 = vmatpush1.msra.mxu0 %v189
      %293 = vmatprep.subr.mxu0 0.0
      %294 = vmatpush1.msra.mxu0 %v190
      %295 = vmatprep.subr.mxu0 0.0
      %296 = vmatpush1.msra.mxu0 %v191
      %297 = vmatprep.subr.mxu0 0.0
      %298 = vmatpush1.msra.mxu0 %v192
      %299 = vmatprep.subr.mxu0 0.0
      %300 = vmatpush1.msra.mxu0 0.0
      %301 = vmatprep.subr.mxu0 0.0
      %302 = vmatpush1.msra.mxu0 0.0
      %303 = vmatprep.subr.mxu0 0.0
      %304 = vmatpush1.msra.mxu0 0.0
      %305 = vmatprep.subr.mxu0 0.0
      %306 = vmatpush1.msra.mxu0 0.0
      %307 = vmatprep.subr.mxu0 0.0
      %308 = vmatpush1.msra.mxu0 0.0
      %309 = vmatprep.subr.mxu0 0.0
      %310 = vmatpush1.msra.mxu0 0.0
      %311 = vmatprep.subr.mxu0 0.0
      %312 = vmatpush1.msra.mxu0 0.0
      %313 = vmatprep.subr.mxu0 0.0
      %314 = vmatpush1.msra.mxu0 0.0
      %315 = vmatprep.subr.mxu0 0.0
      %316 = vmatpush1.msra.mxu0 0.0
      %317 = vmatprep.subr.mxu0 0.0
      %318 = vmatpush1.msra.mxu0 0.0
      %319 = vmatprep.subr.mxu0 0.0
      %320 = vmatpush1.msra.mxu0 0.0
      %321 = vmatprep.subr.mxu0 0.0
      %322 = vmatpush1.msra.mxu0 0.0
      %323 = vmatprep.subr.mxu0 0.0
      %324 = vmatpush1.msra.mxu0 0.0
      %325 = vmatprep.subr.mxu0 0.0
      %326 = vmatpush1.msra.mxu0 0.0
      %327 = vmatprep.subr.mxu0 0.0
      %328 = vmatpush1.msra.mxu0 0.0
      %329 = vmatprep.subr.mxu0 0.0
      %330 = vmatpush1.msra.mxu0 0.0
      %331 = vmatprep.subr.mxu0 0.0
      %332 = vmatpush1.msra.mxu0 0.0
      %333 = vmatprep.subr.mxu0 0.0
      %334 = vmatpush1.msra.mxu0 0.0
      %335 = vmatprep.subr.mxu0 0.0
      %336 = vmatpush1.msra.mxu0 0.0
      %337 = vmatprep.subr.mxu0 0.0
      %338 = vmatpush1.msra.mxu0 0.0
      %339 = vmatprep.subr.mxu0 0.0
      %340 = vmatpush1.msra.mxu0 0.0
      %341 = vmatprep.subr.mxu0 0.0
      %342 = vmatpush1.msra.mxu0 0.0
      %343 = vmatprep.subr.mxu0 0.0
      %344 = vmatpush1.msra.mxu0 0.0
      %345 = vmatprep.subr.mxu0 0.0
      %346 = vmatpush1.msra.mxu0 0.0
      %347 = vmatprep.subr.mxu0 0.0
      %348 = vmatpush1.msra.mxu0 0.0
      %349 = vmatprep.subr.mxu0 0.0
      %350 = vmatpush1.msra.mxu0 0.0
      %351 = vmatprep.subr.mxu0 0.0
      %352 = vmatpush1.msra.mxu0 0.0
      %353 = vmatprep.subr.mxu0 0.0
      %354 = vmatpush1.msra.mxu0 0.0
      %355 = vmatprep.mubr.f32.mxu0 0.0
      %356 = vmatmul.mubr.f32.gmra.mrb[0].mxu0 %v280
      %v357 = vpop.f32.mrb[0].mxu0
      %v358 = vadd.f32 %v261, %v357
      %v359 = vpop.f32.mrb[0].mxu0
      %360 = vmatprep.mubr.f32.mxu0 0.0
      %361 = vmatmul.mubr.f32.gmra.mrb[0].mxu0 %v283
      %v362 = vpop.f32.mrb[0].mxu0
      %v363 = vadd.f32 %v266, %v362
      %v364 = vpop.f32.mrb[0].mxu0
      %365 = vmatprep.mubr.f32.mxu0 0.0
      %366 = vmatmul.mubr.f32.gmra.mrb[0].mxu0 %v286
      %v367 = vpop.f32.mrb[0].mxu0
      %v368 = vadd.f32 %v271, %v367
      %v369 = vpop.f32.mrb[0].mxu0
      %370 = vmatprep.mubr.f32.mxu0 0.0
      %371 = vmatmul.mubr.f32.gmra.mrb[0].mxu0 %v289
      %v372 = vpop.f32.mrb[0].mxu0
      %v373 = vadd.f32 %v276, %v372
      %v374 = vpop.f32.mrb[0].mxu0
      %375 = vdwg.mxu0
      %v376 = vsub.f32 0.0, %v358
      %v377 = vsub.f32 0.0, %v363
      %v378 = vsub.f32 0.0, %v368
      %v379 = vsub.f32 0.0, %v373
      %v380 = vmul.f32 %v376, 1.442695
      %v381 = vpow.pop %v380
      %v382 = vmul.f32 %v377, 1.442695
      %v383 = vpow.pop %v382
      %v384 = vmul.f32 %v378, 1.442695
      %v385 = vpow.pop %v384
      %v386 = vmul.f32 %v379, 1.442695
      %v387 = vpow.pop %v386
      %v388 = vadd.f32 %v381, 1.0
      %v389 = vadd.f32 %v383, 1.0
      %v390 = vadd.f32 %v385, 1.0
      %v391 = vadd.f32 %v387, 1.0
      %v392 = vrcp.pop %v388
      %v393 = vmul.f32 %v358, %v392
      %v394 = vrcp.pop %v389
      %v395 = vmul.f32 %v363, %v394
      %v396 = vrcp.pop %v390
      %v397 = vmul.f32 %v368, %v396
      %v398 = vrcp.pop %v391
      %v399 = vmul.f32 %v373, %v398
      %401 = vset.pattern.permute.xlu0 0
      %402 = vperm.xlu0 %401, %v205
      %v403 = vpop.permute.xlu0 %402
      %406 = vset.pattern.permute.xlu0 0
      %407 = vperm.xlu0 %406, %v206
      %v408 = vpop.permute.xlu0 %407
      %411 = vset.pattern.permute.xlu0 0
      %412 = vperm.xlu0 %411, %v207
      %v413 = vpop.permute.xlu0 %412
      %416 = vset.pattern.permute.xlu0 0
      %417 = vperm.xlu0 %416, %v208
      %v418 = vpop.permute.xlu0 %417
      %v421 = vsel %vm278, %v201, 0
      %v424 = vsel %vm278, %v202, 0
      %v427 = vsel %vm278, %v203, 0
      %v430 = vsel %vm278, %v204, 0
      %432 = vmatprep.subr.mxu0 0.0
      %433 = vmatpush1.msra.mxu0 %v393
      %434 = vmatprep.subr.mxu0 0.0
      %435 = vmatpush1.msra.mxu0 %v395
      %436 = vmatprep.subr.mxu0 0.0
      %437 = vmatpush1.msra.mxu0 %v397
      %438 = vmatprep.subr.mxu0 0.0
      %439 = vmatpush1.msra.mxu0 %v399
      %440 = vmatprep.subr.mxu0 0.0
      %441 = vmatpush1.msra.mxu0 0.0
      %442 = vmatprep.subr.mxu0 0.0
      %443 = vmatpush1.msra.mxu0 0.0
      %444 = vmatprep.subr.mxu0 0.0
      %445 = vmatpush1.msra.mxu0 0.0
      %446 = vmatprep.subr.mxu0 0.0
      %447 = vmatpush1.msra.mxu0 0.0
      %448 = vmatprep.subr.mxu0 0.0
      %449 = vmatpush1.msra.mxu0 0.0
      %450 = vmatprep.subr.mxu0 0.0
      %451 = vmatpush1.msra.mxu0 0.0
      %452 = vmatprep.subr.mxu0 0.0
      %453 = vmatpush1.msra.mxu0 0.0
      %454 = vmatprep.subr.mxu0 0.0
      %455 = vmatpush1.msra.mxu0 0.0
      %456 = vmatprep.subr.mxu0 0.0
      %457 = vmatpush1.msra.mxu0 0.0
      %458 = vmatprep.subr.mxu0 0.0
      %459 = vmatpush1.msra.mxu0 0.0
      %460 = vmatprep.subr.mxu0 0.0
      %461 = vmatpush1.msra.mxu0 0.0
      %462 = vmatprep.subr.mxu0 0.0
      %463 = vmatpush1.msra.mxu0 0.0
      %464 = vmatprep.subr.mxu0 0.0
      %465 = vmatpush1.msra.mxu0 0.0
      %466 = vmatprep.subr.mxu0 0.0
      %467 = vmatpush1.msra.mxu0 0.0
      %468 = vmatprep.subr.mxu0 0.0
      %469 = vmatpush1.msra.mxu0 0.0
      %470 = vmatprep.subr.mxu0 0.0
      %471 = vmatpush1.msra.mxu0 0.0
      %472 = vmatprep.subr.mxu0 0.0
      %473 = vmatpush1.msra.mxu0 0.0
      %474 = vmatprep.subr.mxu0 0.0
      %475 = vmatpush1.msra.mxu0 0.0
      %476 = vmatprep.subr.mxu0 0.0
      %477 = vmatpush1.msra.mxu0 0.0
      %478 = vmatprep.subr.mxu0 0.0
      %479 = vmatpush1.msra.mxu0 0.0
      %480 = vmatprep.subr.mxu0 0.0
      %481 = vmatpush1.msra.mxu0 0.0
      %482 = vmatprep.subr.mxu0 0.0
      %483 = vmatpush1.msra.mxu0 0.0
      %484 = vmatprep.subr.mxu0 0.0
      %485 = vmatpush1.msra.mxu0 0.0
      %486 = vmatprep.subr.mxu0 0.0
      %487 = vmatpush1.msra.mxu0 0.0
      %488 = vmatprep.subr.mxu0 0.0
      %489 = vmatpush1.msra.mxu0 0.0
      %490 = vmatprep.subr.mxu0 0.0
      %491 = vmatpush1.msra.mxu0 0.0
      %492 = vmatprep.subr.mxu0 0.0
      %493 = vmatpush1.msra.mxu0 0.0
      %494 = vmatprep.subr.mxu0 0.0
      %495 = vmatpush1.msra.mxu0 0.0
      %496 = vmatprep.mubr.f32.mxu0 0.0
      %497 = vmatmul.mubr.f32.gmra.mrb[0].mxu0 %v421
      %v498 = vpop.f32.mrb[0].mxu0
      %v499 = vadd.f32 %v403, %v498
      %v500 = vpop.f32.mrb[0].mxu0
      %501 = vmatprep.mubr.f32.mxu0 0.0
      %502 = vmatmul.mubr.f32.gmra.mrb[0].mxu0 %v424
      %v503 = vpop.f32.mrb[0].mxu0
      %v504 = vadd.f32 %v408, %v503
      %v505 = vpop.f32.mrb[0].mxu0
      %506 = vmatprep.mubr.f32.mxu0 0.0
      %507 = vmatmul.mubr.f32.gmra.mrb[0].mxu0 %v427
      %v508 = vpop.f32.mrb[0].mxu0
      %v509 = vadd.f32 %v413, %v508
      %v510 = vpop.f32.mrb[0].mxu0
      %511 = vmatprep.mubr.f32.mxu0 0.0
      %512 = vmatmul.mubr.f32.gmra.mrb[0].mxu0 %v430
      %v513 = vpop.f32.mrb[0].mxu0
      %v514 = vadd.f32 %v418, %v513
      %v515 = vpop.f32.mrb[0].mxu0
      %516 = vdwg.mxu0
      %v517 = vsub.f32 0.0, %v499
      %v518 = vsub.f32 0.0, %v504
      %v519 = vsub.f32 0.0, %v509
      %v520 = vsub.f32 0.0, %v514
      %v521 = vmul.f32 %v517, 1.442695
      %v522 = vpow.pop %v521
      %v523 = vmul.f32 %v518, 1.442695
      %v524 = vpow.pop %v523
      %v525 = vmul.f32 %v519, 1.442695
      %v526 = vpow.pop %v525
      %v527 = vmul.f32 %v520, 1.442695
      %v528 = vpow.pop %v527
      %v529 = vadd.f32 %v522, 1.0
      %v530 = vadd.f32 %v524, 1.0
      %v531 = vadd.f32 %v526, 1.0
      %v532 = vadd.f32 %v528, 1.0
      %v533 = vrcp.pop %v529
      %v534 = vmul.f32 %v499, %v533
      %v535 = vrcp.pop %v530
      %v536 = vmul.f32 %v504, %v535
      %v537 = vrcp.pop %v531
      %v538 = vmul.f32 %v509, %v537
      %v539 = vrcp.pop %v532
      %v540 = vmul.f32 %v514, %v539
      %v541 = vmul.f32 %v534, %v233
      %v542 = vmul.f32 %v536, %v233
      %v543 = vmul.f32 %v538, %v233
      %v544 = vmul.f32 %v540, %v233
      %vm545 = vcmask 64512
      %v546 = vsel %vm545, %v541, 0.0
      %547 = vadd.xlane.f32.xlu0 %v546
      %v548 = vpop.xlane.xlu0 %547
      %v549 = vsel %vm545, %v542, 0.0
      %550 = vadd.xlane.f32.xlu0 %v549
      %v551 = vpop.xlane.xlu0 %550
      %v552 = vsel %vm545, %v543, 0.0
      %553 = vadd.xlane.f32.xlu0 %v552
      %v554 = vpop.xlane.xlu0 %553
      %v555 = vsel %vm545, %v544, 0.0
      %556 = vadd.xlane.f32.xlu0 %v555
      %v557 = vpop.xlane.xlu0 %556
      %v558 = vld [vmem:[%s180] sm:$0xff]
      %v559 = vld [vmem:[%s184] sm:$0xff]
      %v560 = vlaneseq
      %v561 = vshrl.u32 %v560, 7
      %v562 = vsub.s32 0, %v561
      %v563 = vrot.slane %v245, %v562
      %v564 = vmul.f32 %v563, %v558
      %v565 = vlaneseq
      %v566 = vshrl.u32 %v565, 7
      %v567 = vsub.s32 0, %v566
      %v568 = vrot.slane %v257, %v567
      %v569 = vmul.f32 %v568, %v559
      %v570 = vadd.f32 %v564, %v569
      %572 = vset.pattern.permute.xlu0 0
      %573 = vperm.xlu0 %572, %v213
      %v574 = vpop.permute.xlu0 %573
      %577 = vset.pattern.permute.xlu0 0
      %578 = vperm.xlu0 %577, %v214
      %v579 = vpop.permute.xlu0 %578
      %582 = vset.pattern.permute.xlu0 0
      %583 = vperm.xlu0 %582, %v215
      %v584 = vpop.permute.xlu0 %583
      %587 = vset.pattern.permute.xlu0 0
      %588 = vperm.xlu0 %587, %v216
      %v589 = vpop.permute.xlu0 %588
      %v592 = vsel %vm545, %v209, 0
      %v595 = vsel %vm545, %v210, 0
      %v598 = vsel %vm545, %v211, 0
      %v601 = vsel %vm545, %v212, 0
      %603 = vmatprep.subr.mxu0 0.0
      %604 = vmatpush1.msra.mxu0 %v570
      %605 = vmatprep.subr.mxu0 0.0
      %606 = vmatpush1.msra.mxu0 0.0
      %607 = vmatprep.subr.mxu0 0.0
      %608 = vmatpush1.msra.mxu0 0.0
      %609 = vmatprep.subr.mxu0 0.0
      %610 = vmatpush1.msra.mxu0 0.0
      %611 = vmatprep.subr.mxu0 0.0
      %612 = vmatpush1.msra.mxu0 0.0
      %613 = vmatprep.subr.mxu0 0.0
      %614 = vmatpush1.msra.mxu0 0.0
      %615 = vmatprep.subr.mxu0 0.0
      %616 = vmatpush1.msra.mxu0 0.0
      %617 = vmatprep.subr.mxu0 0.0
      %618 = vmatpush1.msra.mxu0 0.0
      %619 = vmatprep.subr.mxu0 0.0
      %620 = vmatpush1.msra.mxu0 0.0
      %621 = vmatprep.subr.mxu0 0.0
      %622 = vmatpush1.msra.mxu0 0.0
      %623 = vmatprep.subr.mxu0 0.0
      %624 = vmatpush1.msra.mxu0 0.0
      %625 = vmatprep.subr.mxu0 0.0
      %626 = vmatpush1.msra.mxu0 0.0
      %627 = vmatprep.subr.mxu0 0.0
      %628 = vmatpush1.msra.mxu0 0.0
      %629 = vmatprep.subr.mxu0 0.0
      %630 = vmatpush1.msra.mxu0 0.0
      %631 = vmatprep.subr.mxu0 0.0
      %632 = vmatpush1.msra.mxu0 0.0
      %633 = vmatprep.subr.mxu0 0.0
      %634 = vmatpush1.msra.mxu0 0.0
      %635 = vmatprep.subr.mxu0 0.0
      %636 = vmatpush1.msra.mxu0 0.0
      %637 = vmatprep.subr.mxu0 0.0
      %638 = vmatpush1.msra.mxu0 0.0
      %639 = vmatprep.subr.mxu0 0.0
      %640 = vmatpush1.msra.mxu0 0.0
      %641 = vmatprep.subr.mxu0 0.0
      %642 = vmatpush1.msra.mxu0 0.0
      %643 = vmatprep.subr.mxu0 0.0
      %644 = vmatpush1.msra.mxu0 0.0
      %645 = vmatprep.subr.mxu0 0.0
      %646 = vmatpush1.msra.mxu0 0.0
      %647 = vmatprep.subr.mxu0 0.0
      %648 = vmatpush1.msra.mxu0 0.0
      %649 = vmatprep.subr.mxu0 0.0
      %650 = vmatpush1.msra.mxu0 0.0
      %651 = vmatprep.subr.mxu0 0.0
      %652 = vmatpush1.msra.mxu0 0.0
      %653 = vmatprep.subr.mxu0 0.0
      %654 = vmatpush1.msra.mxu0 0.0
      %655 = vmatprep.subr.mxu0 0.0
      %656 = vmatpush1.msra.mxu0 0.0
      %657 = vmatprep.subr.mxu0 0.0
      %658 = vmatpush1.msra.mxu0 0.0
      %659 = vmatprep.subr.mxu0 0.0
      %660 = vmatpush1.msra.mxu0 0.0
      %661 = vmatprep.subr.mxu0 0.0
      %662 = vmatpush1.msra.mxu0 0.0
      %663 = vmatprep.subr.mxu0 0.0
      %664 = vmatpush1.msra.mxu0 0.0
      %665 = vmatprep.subr.mxu0 0.0
      %666 = vmatpush1.msra.mxu0 0.0
      %667 = vmatprep.mubr.f32.mxu0 0.0
      %668 = vmatmul.mubr.f32.gmra.mrb[0].mxu0 %v592
      %v669 = vpop.f32.mrb[0].mxu0
      %v670 = vadd.f32 %v574, %v669
      %v671 = vpop.f32.mrb[0].mxu0
      %672 = vmatprep.mubr.f32.mxu0 0.0
      %673 = vmatmul.mubr.f32.gmra.mrb[0].mxu0 %v595
      %v674 = vpop.f32.mrb[0].mxu0
      %v675 = vadd.f32 %v579, %v674
      %v676 = vpop.f32.mrb[0].mxu0
      %677 = vmatprep.mubr.f32.mxu0 0.0
      %678 = vmatmul.mubr.f32.gmra.mrb[0].mxu0 %v598
      %v679 = vpop.f32.mrb[0].mxu0
      %v680 = vadd.f32 %v584, %v679
      %v681 = vpop.f32.mrb[0].mxu0
      %682 = vmatprep.mubr.f32.mxu0 0.0
      %683 = vmatmul.mubr.f32.gmra.mrb[0].mxu0 %v601
      %v684 = vpop.f32.mrb[0].mxu0
      %v685 = vadd.f32 %v589, %v684
      %v686 = vpop.f32.mrb[0].mxu0
      %687 = vdwg.mxu0
      %v688 = vmax.f32 %v670, 0.0
      %v689 = vmax.f32 %v675, 0.0
      %v690 = vmax.f32 %v680, 0.0
      %v691 = vmax.f32 %v685, 0.0
      %v692 = vadd.f32 %v688, %v548
      %v693 = vadd.f32 %v689, %v551
      %v694 = vadd.f32 %v690, %v554
      %v695 = vadd.f32 %v691, %v557
      %697 = vset.pattern.permute.xlu0 0
      %698 = vperm.xlu0 %697, %v221
      %v699 = vpop.permute.xlu0 %698
      %702 = vset.pattern.permute.xlu0 0
      %703 = vperm.xlu0 %702, %v222
      %v704 = vpop.permute.xlu0 %703
      %707 = vset.pattern.permute.xlu0 0
      %708 = vperm.xlu0 %707, %v223
      %v709 = vpop.permute.xlu0 %708
      %712 = vset.pattern.permute.xlu0 0
      %713 = vperm.xlu0 %712, %v224
      %v714 = vpop.permute.xlu0 %713
      %v717 = vsel %vm278, %v217, 0
      %v720 = vsel %vm278, %v218, 0
      %v723 = vsel %vm278, %v219, 0
      %v726 = vsel %vm278, %v220, 0
      %728 = vmatprep.subr.mxu0 0.0
      %729 = vmatpush1.msra.mxu0 %v692
      %730 = vmatprep.subr.mxu0 0.0
      %731 = vmatpush1.msra.mxu0 %v693
      %732 = vmatprep.subr.mxu0 0.0
      %733 = vmatpush1.msra.mxu0 %v694
      %734 = vmatprep.subr.mxu0 0.0
      %735 = vmatpush1.msra.mxu0 %v695
      %736 = vmatprep.subr.mxu0 0.0
      %737 = vmatpush1.msra.mxu0 0.0
      %738 = vmatprep.subr.mxu0 0.0
      %739 = vmatpush1.msra.mxu0 0.0
      %740 = vmatprep.subr.mxu0 0.0
      %741 = vmatpush1.msra.mxu0 0.0
      %742 = vmatprep.subr.mxu0 0.0
      %743 = vmatpush1.msra.mxu0 0.0
      %744 = vmatprep.subr.mxu0 0.0
      %745 = vmatpush1.msra.mxu0 0.0
      %746 = vmatprep.subr.mxu0 0.0
      %747 = vmatpush1.msra.mxu0 0.0
      %748 = vmatprep.subr.mxu0 0.0
      %749 = vmatpush1.msra.mxu0 0.0
      %750 = vmatprep.subr.mxu0 0.0
      %751 = vmatpush1.msra.mxu0 0.0
      %752 = vmatprep.subr.mxu0 0.0
      %753 = vmatpush1.msra.mxu0 0.0
      %754 = vmatprep.subr.mxu0 0.0
      %755 = vmatpush1.msra.mxu0 0.0
      %756 = vmatprep.subr.mxu0 0.0
      %757 = vmatpush1.msra.mxu0 0.0
      %758 = vmatprep.subr.mxu0 0.0
      %759 = vmatpush1.msra.mxu0 0.0
      %760 = vmatprep.subr.mxu0 0.0
      %761 = vmatpush1.msra.mxu0 0.0
      %762 = vmatprep.subr.mxu0 0.0
      %763 = vmatpush1.msra.mxu0 0.0
      %764 = vmatprep.subr.mxu0 0.0
      %765 = vmatpush1.msra.mxu0 0.0
      %766 = vmatprep.subr.mxu0 0.0
      %767 = vmatpush1.msra.mxu0 0.0
      %768 = vmatprep.subr.mxu0 0.0
      %769 = vmatpush1.msra.mxu0 0.0
      %770 = vmatprep.subr.mxu0 0.0
      %771 = vmatpush1.msra.mxu0 0.0
      %772 = vmatprep.subr.mxu0 0.0
      %773 = vmatpush1.msra.mxu0 0.0
      %774 = vmatprep.subr.mxu0 0.0
      %775 = vmatpush1.msra.mxu0 0.0
      %776 = vmatprep.subr.mxu0 0.0
      %777 = vmatpush1.msra.mxu0 0.0
      %778 = vmatprep.subr.mxu0 0.0
      %779 = vmatpush1.msra.mxu0 0.0
      %780 = vmatprep.subr.mxu0 0.0
      %781 = vmatpush1.msra.mxu0 0.0
      %782 = vmatprep.subr.mxu0 0.0
      %783 = vmatpush1.msra.mxu0 0.0
      %784 = vmatprep.subr.mxu0 0.0
      %785 = vmatpush1.msra.mxu0 0.0
      %786 = vmatprep.subr.mxu0 0.0
      %787 = vmatpush1.msra.mxu0 0.0
      %788 = vmatprep.subr.mxu0 0.0
      %789 = vmatpush1.msra.mxu0 0.0
      %790 = vmatprep.subr.mxu0 0.0
      %791 = vmatpush1.msra.mxu0 0.0
      %792 = vmatprep.mubr.f32.mxu0 0.0
      %793 = vmatmul.mubr.f32.gmra.mrb[0].mxu0 %v717
      %v794 = vpop.f32.mrb[0].mxu0
      %v795 = vadd.f32 %v699, %v794
      %v796 = vpop.f32.mrb[0].mxu0
      %797 = vmatprep.mubr.f32.mxu0 0.0
      %798 = vmatmul.mubr.f32.gmra.mrb[0].mxu0 %v720
      %v799 = vpop.f32.mrb[0].mxu0
      %v800 = vadd.f32 %v704, %v799
      %v801 = vpop.f32.mrb[0].mxu0
      %802 = vmatprep.mubr.f32.mxu0 0.0
      %803 = vmatmul.mubr.f32.gmra.mrb[0].mxu0 %v723
      %v804 = vpop.f32.mrb[0].mxu0
      %v805 = vadd.f32 %v709, %v804
      %v806 = vpop.f32.mrb[0].mxu0
      %807 = vmatprep.mubr.f32.mxu0 0.0
      %808 = vmatmul.mubr.f32.gmra.mrb[0].mxu0 %v726
      %v809 = vpop.f32.mrb[0].mxu0
      %v810 = vadd.f32 %v714, %v809
      %v811 = vpop.f32.mrb[0].mxu0
      %812 = vdwg.mxu0
      %v813 = vmax.f32 %v795, 0.0
      %v814 = vmax.f32 %v800, 0.0
      %v815 = vmax.f32 %v805, 0.0
      %v816 = vmax.f32 %v810, 0.0
      %818 = vset.pattern.permute.xlu0 0
      %819 = vperm.xlu0 %818, %v226
      %v820 = vpop.permute.xlu0 %819
      %v823 = vsel %vm278, %v225, 0
      %825 = vmatprep.subr.mxu0 0.0
      %826 = vmatpush1.msra.mxu0 %v813
      %827 = vmatprep.subr.mxu0 0.0
      %828 = vmatpush1.msra.mxu0 %v814
      %829 = vmatprep.subr.mxu0 0.0
      %830 = vmatpush1.msra.mxu0 %v815
      %831 = vmatprep.subr.mxu0 0.0
      %832 = vmatpush1.msra.mxu0 %v816
      %833 = vmatprep.subr.mxu0 0.0
      %834 = vmatpush1.msra.mxu0 0.0
      %835 = vmatprep.subr.mxu0 0.0
      %836 = vmatpush1.msra.mxu0 0.0
      %837 = vmatprep.subr.mxu0 0.0
      %838 = vmatpush1.msra.mxu0 0.0
      %839 = vmatprep.subr.mxu0 0.0
      %840 = vmatpush1.msra.mxu0 0.0
      %841 = vmatprep.subr.mxu0 0.0
      %842 = vmatpush1.msra.mxu0 0.0
      %843 = vmatprep.subr.mxu0 0.0
      %844 = vmatpush1.msra.mxu0 0.0
      %845 = vmatprep.subr.mxu0 0.0
      %846 = vmatpush1.msra.mxu0 0.0
      %847 = vmatprep.subr.mxu0 0.0
      %848 = vmatpush1.msra.mxu0 0.0
      %849 = vmatprep.subr.mxu0 0.0
      %850 = vmatpush1.msra.mxu0 0.0
      %851 = vmatprep.subr.mxu0 0.0
      %852 = vmatpush1.msra.mxu0 0.0
      %853 = vmatprep.subr.mxu0 0.0
      %854 = vmatpush1.msra.mxu0 0.0
      %855 = vmatprep.subr.mxu0 0.0
      %856 = vmatpush1.msra.mxu0 0.0
      %857 = vmatprep.subr.mxu0 0.0
      %858 = vmatpush1.msra.mxu0 0.0
      %859 = vmatprep.subr.mxu0 0.0
      %860 = vmatpush1.msra.mxu0 0.0
      %861 = vmatprep.subr.mxu0 0.0
      %862 = vmatpush1.msra.mxu0 0.0
      %863 = vmatprep.subr.mxu0 0.0
      %864 = vmatpush1.msra.mxu0 0.0
      %865 = vmatprep.subr.mxu0 0.0
      %866 = vmatpush1.msra.mxu0 0.0
      %867 = vmatprep.subr.mxu0 0.0
      %868 = vmatpush1.msra.mxu0 0.0
      %869 = vmatprep.subr.mxu0 0.0
      %870 = vmatpush1.msra.mxu0 0.0
      %871 = vmatprep.subr.mxu0 0.0
      %872 = vmatpush1.msra.mxu0 0.0
      %873 = vmatprep.subr.mxu0 0.0
      %874 = vmatpush1.msra.mxu0 0.0
      %875 = vmatprep.subr.mxu0 0.0
      %876 = vmatpush1.msra.mxu0 0.0
      %877 = vmatprep.subr.mxu0 0.0
      %878 = vmatpush1.msra.mxu0 0.0
      %879 = vmatprep.subr.mxu0 0.0
      %880 = vmatpush1.msra.mxu0 0.0
      %881 = vmatprep.subr.mxu0 0.0
      %882 = vmatpush1.msra.mxu0 0.0
      %883 = vmatprep.subr.mxu0 0.0
      %884 = vmatpush1.msra.mxu0 0.0
      %885 = vmatprep.subr.mxu0 0.0
      %886 = vmatpush1.msra.mxu0 0.0
      %887 = vmatprep.subr.mxu0 0.0
      %888 = vmatpush1.msra.mxu0 0.0
      %889 = vmatprep.mubr.f32.mxu0 0.0
      %890 = vmatmul.mubr.f32.gmra.mrb[0].mxu0 %v823
      %v891 = vpop.f32.mrb[0].mxu0
      %v892 = vadd.f32 %v820, %v891
      %v893 = vpop.f32.mrb[0].mxu0
      %894 = vdwg.mxu0
      %v895 = vsub.f32 %v559, %v892
      %v896 = vmul.f32 %v895, %v895
      %vm897 = vcmask 130048
      %v898 = vsel %vm897, %v896, 0.0
      %899 = vadd.xlane.f32.xlu0 %v898
      %v900 = vpop.xlane.xlu0 %899
      %v901 = vrot.slane %v900, 4
      %v902 = vadd.f32 %v900, %v901
      %v903 = vrot.slane %v902, 2
      %v904 = vadd.f32 %v902, %v903
      %v905 = vrot.slane %v904, 1
      %v906 = vadd.f32 %v904, %v905
      %s907 = vtos %v906
      %v908 = vstv %s907
      %vm909 = vcmask 0
      %910 = vst.msk [vmem:[%s187] sm:$0x1] %vm909, %v908
      %p911 = scmp.lt.s32.totalorder %s21, 1
      %s912 = scalar_select %p911, %s21, 1
      %s913 = scalar_lea.vmem %s4, %s912
      // Predicated region
      $region33: #{csdi_my_loss_pallas.1} parent=31 // pred_check
        %p914 = pneg %p112
      $region34: #{csdi_my_loss_pallas.1} parent=31 // pred_check_branch
        %916 = sbr.rel (%p914) target = $region36
      $region35: #{csdi_my_loss_pallas.1} parent=31 // pred_region
        _
      $region36: #{csdi_my_loss_pallas.1} parent=31 // pred_fallthru
        _
    $region32: #{csdi_my_loss_pallas.1} parent=5 // pred_fallthru
      _
    %p917 = scmp.le.s32.totalorder 2, %s16
    // Predicated region
    $region37: #{csdi_my_loss_pallas.1} parent=5 // pred_check
      %p918 = pneg %p917
    $region38: #{csdi_my_loss_pallas.1} parent=5 // pred_check_branch
      %920 = sbr.rel (%p918) target = $region40
    $region39: #{csdi_my_loss_pallas.1} parent=5 // pred_region
      %s921 = ssub.s32 %s16, 2
      // Predicated region
      $region41: #{csdi_my_loss_pallas.1} parent=39 // pred_check
        %p922 = pneg %p118
      $region42: #{csdi_my_loss_pallas.1} parent=39 // pred_check_branch
        %924 = sbr.rel (%p922) target = $region44
      $region43: #{csdi_my_loss_pallas.1} parent=39 // pred_region
        %p925 = scmp.lt.s32.totalorder %s22, 1
        %s926 = scalar_select %p925, %s22, 1
        %s927 = scalar_lea.vmem %s4, %s926
      $region44: #{csdi_my_loss_pallas.1} parent=39 // pred_fallthru
        _
    $region40: #{csdi_my_loss_pallas.1} parent=5 // pred_fallthru
      _
  $region6: #{csdi_my_loss_pallas.1} parent=0 // loop_footer
    %s20 = sadd.s32 1, %s16
  $region7: #{csdi_my_loss_pallas.1} parent=0 // loop_footer_branch
    %15 = sbr.rel target = $region3
  $region8: #{csdi_my_loss_pallas.1} parent=0 // loop_exit
    _

</llo_original>
